<compile_context>
chip_gen: v6e
topology: v6e:2x2x1
jax: 0.10.0
libtpu: 0.0.40
codegen_flags: <defaults>
</compile_context>

<pallas_src>
import jax
import jax.numpy as jnp
from jax.experimental import pallas as pl
from jax.experimental.pallas import tpu as pltpu


def _policy_kernel(w_ref, b_ref, x_ref, out_ref):
    # w_ref: (3,) f32 in SMEM  -- folded w1 @ w2
    # b_ref: (1,) f32 in SMEM  -- folded b1 @ w2 + b2
    # x_ref: (tile_b, 3) f32 in VMEM
    # out_ref: (tile_b, 1) f32 in VMEM
    x = x_ref[...]                                   # (tile_b, 3)
    out = (x[:, 0:1] * w_ref[0]
           + x[:, 1:2] * w_ref[1]
           + x[:, 2:3] * w_ref[2]
           + b_ref[0])                               # (tile_b, 1), pure VPU
    out_ref[...] = out


def policy_forward(x, w1, b1, w2, b2, *, batch_tile=512):
    """Returns (mu, sigma, state_values); all three are l2(l1(x)) as in the
    PyTorch reference."""
    # Algebraic layer folding (valid because there is no activation between
    # l1 and l2): collapses the (B,128) intermediate and the (128,1) matmul.
    w_eff = (w1 @ w2).reshape(3).astype(jnp.float32)        # (3,)
    b_eff = (b1 @ w2 + b2).reshape(1).astype(jnp.float32)   # (1,)

    B = x.shape[0]
    smem_spec = pl.BlockSpec(memory_space=pltpu.MemorySpace.SMEM)

    if B >= batch_tile and B % batch_tile == 0:
        # Large batch: tile the batch axis and shard it across TensorCores
        # (2x on v7x; pipelining only on v5e/v6e).
        grid = (B // batch_tile,)
        in_specs = [
            smem_spec,
            smem_spec,
            pl.BlockSpec((batch_tile, 3), lambda i: (i, 0)),
        ]
        out_specs = pl.BlockSpec((batch_tile, 1), lambda i: (i, 0))
        compiler_params = pltpu.CompilerParams(
            dimension_semantics=("parallel",))
    else:
        # Tiny batch: grid-less, single invocation (no per-step overhead).
        grid = ()
        in_specs = [
            smem_spec,
            smem_spec,
            pl.BlockSpec((B, 3), lambda: (0, 0)),
        ]
        out_specs = pl.BlockSpec((B, 1), lambda: (0, 0))
        compiler_params = None

    out = pl.pallas_call(
        _policy_kernel,
        out_shape=jax.ShapeDtypeStruct((B, 1), jnp.float32),
        grid=grid,
        in_specs=in_specs,
        out_specs=out_specs,
        compiler_params=compiler_params,
    )(w_eff, b_eff, x)

    # mu, sigma, state_values are all the identical tensor in the reference
    # forward, so emit one lane-cheap output and alias it in the wrapper.
    return out, out, out


def init_params(key):
    # Deterministic init mimicking PyTorch nn.Linear default:
    # uniform(-1/sqrt(fan_in), 1/sqrt(fan_in)) for both weight and bias.
    # Weights stored as (in, out) so the math is x @ W (PyTorch does x @ W.T).
    k1, k2, k3, k4 = jax.random.split(key, 4)
    bound1 = 1.0 / jnp.sqrt(3.0)
    bound2 = 1.0 / jnp.sqrt(128.0)
    w1 = jax.random.uniform(k1, (3, 128), jnp.float32, -bound1, bound1)
    b1 = jax.random.uniform(k2, (1, 128), jnp.float32, -bound1, bound1)
    w2 = jax.random.uniform(k3, (128, 1), jnp.float32, -bound2, bound2)
    b2 = jax.random.uniform(k4, (1, 1), jnp.float32, -bound2, bound2)
    return w1, b1, w2, b2


if __name__ == "__main__":
    key = jax.random.PRNGKey(0)
    kx, kp = jax.random.split(key)

    B = 8  # small batch
    x = jax.random.normal(kx, (B, 3), jnp.float32)
    w1, b1, w2, b2 = init_params(kp)

    mu, sigma, state_values = policy_forward(x, w1, b1, w2, b2)
    jax.block_until_ready((mu, sigma, state_values))

    # Reference check in plain JAX (same math as the PyTorch forward).
    h_ref = x @ w1 + b1
    out_ref = h_ref @ w2 + b2
    assert jnp.allclose(mu, out_ref, atol=1e-5)
    assert jnp.allclose(sigma, out_ref, atol=1e-5)
    assert jnp.allclose(state_values, out_ref, atol=1e-5)

    print("KERNEL_OK")
</pallas_src>

<mosaic_0001>
module attributes {stable_mosaic.version = 11 : i64} {
  func.func @_policy_kernel(%arg0: memref<3xf32, #tpu.memory_space<smem>>, %arg1: memref<1xf32, #tpu.memory_space<smem>>, %arg2: memref<8x3xf32, #tpu.memory_space<vmem>>, %arg3: memref<8x1xf32, #tpu.memory_space<vmem>>) attributes {dimension_semantics = [], scalar_prefetch = 0 : i64, scratch_operands = 0 : i64, tpu.core_type = #tpu.core_type<tc>} {
    %c0 = arith.constant 0 : index
    %c0_0 = arith.constant 0 : index
    %0 = vector.load %arg2[%c0, %c0_0] : memref<8x3xf32, #tpu.memory_space<vmem>>, vector<8x3xf32>
    %1 = vector.extract_strided_slice %0 {offsets = [0, 0], sizes = [8, 1], strides = [1, 1]} : vector<8x3xf32> to vector<8x1xf32>
    %c0_1 = arith.constant 0 : index
    %2 = memref.load %arg0[%c0_1] : memref<3xf32, #tpu.memory_space<smem>>
    %3 = vector.broadcast %2 : f32 to vector<8x1xf32>
    %4 = arith.mulf %1, %3 : vector<8x1xf32>
    %5 = vector.extract_strided_slice %0 {offsets = [0, 1], sizes = [8, 1], strides = [1, 1]} : vector<8x3xf32> to vector<8x1xf32>
    %c1 = arith.constant 1 : index
    %6 = memref.load %arg0[%c1] : memref<3xf32, #tpu.memory_space<smem>>
    %7 = vector.broadcast %6 : f32 to vector<8x1xf32>
    %8 = arith.mulf %5, %7 : vector<8x1xf32>
    %9 = arith.addf %4, %8 : vector<8x1xf32>
    %10 = vector.extract_strided_slice %0 {offsets = [0, 2], sizes = [8, 1], strides = [1, 1]} : vector<8x3xf32> to vector<8x1xf32>
    %c2 = arith.constant 2 : index
    %11 = memref.load %arg0[%c2] : memref<3xf32, #tpu.memory_space<smem>>
    %12 = vector.broadcast %11 : f32 to vector<8x1xf32>
    %13 = arith.mulf %10, %12 : vector<8x1xf32>
    %14 = arith.addf %9, %13 : vector<8x1xf32>
    %c0_2 = arith.constant 0 : index
    %15 = memref.load %arg1[%c0_2] : memref<1xf32, #tpu.memory_space<smem>>
    %16 = vector.broadcast %15 : f32 to vector<8x1xf32>
    %17 = arith.addf %14, %16 : vector<8x1xf32>
    %c0_3 = arith.constant 0 : index
    %c0_4 = arith.constant 0 : index
    %18 = vector.load %arg3[%c0_3, %c0_4] : memref<8x1xf32, #tpu.memory_space<vmem>>, vector<8x1xf32>
    tpu.vector_store %arg3[%c0_3, %c0_4], %17 {strides = array<i32>} : memref<8x1xf32, #tpu.memory_space<vmem>>, vector<8x1xf32>,
    return
  }
}

</mosaic_0001>

<llo_original>
// kernel: tpu_custom_call.1
$region0: #{tpu_custom_call.1}
  #allocation0 [shape = 'u32[]', space=smem, size = 0x4, offset = 0x4, fixed_abs, tag = 'smem constant byte address 0x4 - core index']
  #allocation1 [shape = 'u32[144,128]{1,0:T(1,128)}', space=vmem, size = 0x12000, scoped, tag = 'internal scratch']
  #allocation2 [shape = 'f32[1]{0:T(128)S(6)}', space=smem, size = 0x200, scoped, tag = 'scoped memory for tpu_custom_call.1']
  %s0 = inlined_call_operand.vmem [shape: f32[3], index: 0, kind: input, shape index: {}]
  %s1 = inlined_call_operand.<no memory space> [shape: f32[1], index: 1, kind: input, shape index: {}]
  %s2 = inlined_call_operand.vmem [shape: f32[8,3], index: 2, kind: input, shape index: {}]
  %s3 = inlined_call_operand.vmem [shape: f32[8,1], index: 3, kind: output, shape index: {}]
  %s4 = sld [smem:[#allocation0]]
  $region26: #{tpu_custom_call.1} parent=0
    _
  %s6 = ssub.s32 1, %s4
  %s7 = scalar_select 0, %s6, %s4
  %8 = sst [smem:[#allocation2]] %s1
  $region1: #{tpu_custom_call.1} parent=0
    #allocation3 [shape = 'u8[512]{0}', space=smem, size = 0x200, scoped, tag = 'input window, operand 0, single buffered']
    #allocation4 [shape = 's32[1]{0}', space=sflag, size = 0x4, scoped, tag = 'scoped memory for tpu_custom_call.1']
    %9 = vsyncpa [#allocation4], 0
    // Predicated region
    $region2: #{tpu_custom_call.1} parent=1 // pred_check
      _
    $region3: #{tpu_custom_call.1} parent=1 // pred_check_branch
      %11 = sbr.rel (0) target = $region5
    $region4: #{tpu_custom_call.1} parent=1 // pred_region
      %s13 = ssub.s32 16, 16
      %14 = vsyncadd [#allocation4], %s13
      %s16 = sshll.u32 %s0, 4
      %s17 = int_to_ptr.vmem [resolvable:$true] %s16
      %19 = dma.vmem_to_smem %s17, 16, [#allocation3], [#allocation4]
    $region5: #{tpu_custom_call.1} parent=1 // pred_fallthru
      _
    // Predicated region
    $region6: #{tpu_custom_call.1} parent=1 // pred_check
      _
    $region7: #{tpu_custom_call.1} parent=1 // pred_check_branch
      %21 = sbr.rel (0) target = $region9
    $region8: #{tpu_custom_call.1} parent=1 // pred_region
      _
    $region9: #{tpu_custom_call.1} parent=1 // pred_fallthru
      _
    // Predicated region
    $region10: #{tpu_custom_call.1} parent=1 // pred_check
      _
    $region11: #{tpu_custom_call.1} parent=1 // pred_check_branch
      %23 = sbr.rel (0) target = $region13
    $region12: #{tpu_custom_call.1} parent=1 // pred_region
      _
    $region13: #{tpu_custom_call.1} parent=1 // pred_fallthru
      _
    // Predicated region
    $region14: #{tpu_custom_call.1} parent=1 // pred_check
      _
    $region15: #{tpu_custom_call.1} parent=1 // pred_check_branch
      %25 = sbr.rel (0) target = $region17
    $region16: #{tpu_custom_call.1} parent=1 // pred_region
      %26 = dma.done [#allocation4], 16
    $region17: #{tpu_custom_call.1} parent=1 // pred_fallthru
      _
    %27 = sfence
    %v28 = vld [vmem:[%s2] sm:$0xff]
    %s29 = sld [smem:[#allocation3]]
    %v30 = vstv %s29
    %v31 = vmul.f32 %v28, %v30
    %s32 = sld [smem:[#allocation3 + $0x1]]
    %v33 = vstv %s32
    %v34 = vmul.f32 %v28, %v33
    %36 = vrot.lane.b32.xlu0 %v34, 127
    %v37 = vpop.permute.xlu0 %36
    %v39 = vadd.f32 %v31, %v37
    %s40 = sld [smem:[#allocation3 + $0x2]]
    %v41 = vstv %s40
    %v42 = vmul.f32 %v28, %v41
    %44 = vrot.lane.b32.xlu0 %v42, 126
    %v45 = vpop.permute.xlu0 %44
    %v47 = vadd.f32 %v39, %v45
    %s48 = sld [smem:[#allocation2]]
    %v49 = vstv %s48
    %v50 = vadd.f32 %v47, %v49
    %vm51 = vcmask 7168
    %52 = vst.msk [vmem:[%s3] sm:$0xff] %vm51, %v50
    // Predicated region
    $region18: #{tpu_custom_call.1} parent=1 // pred_check
      _
    $region19: #{tpu_custom_call.1} parent=1 // pred_check_branch
      %54 = sbr.rel (0) target = $region21
    $region20: #{tpu_custom_call.1} parent=1 // pred_region
      _
    $region21: #{tpu_custom_call.1} parent=1 // pred_fallthru
      _
    // Predicated region
    $region22: #{tpu_custom_call.1} parent=1 // pred_check
      _
    $region23: #{tpu_custom_call.1} parent=1 // pred_check_branch
      %56 = sbr.rel (0) target = $region25
    $region24: #{tpu_custom_call.1} parent=1 // pred_region
      _
    $region25: #{tpu_custom_call.1} parent=1 // pred_fallthru
      _
    %57 = vsyncpa [#allocation4], 1

</llo_original>
